<compile_context>
chip_gen: v6e
topology: v6e:2x2x1
jax: 0.10.0
libtpu: 0.0.40
codegen_flags: <defaults>
</compile_context>

<pallas_src>
import functools

import jax
import jax.numpy as jnp
from jax import lax
from jax.experimental import pallas as pl
from jax.experimental.pallas import tpu as pltpu

LANES = 128
TARGET_BLOCK_BYTES = 2 << 20   # ~2 MiB per input block per grid step (v5e-safe)


def _round_up(v, m):
    return (v + m - 1) // m * m


def _pearson_partial_kernel(main_rows, block_rows, rps,
                            x_ref, y_ref, o_ref,
                            sx_ref, sy_ref, sxy_ref, sxx_ref, syy_ref):
    i = pl.program_id(0)
    full_blocks = main_rows // block_rows               # python int
    tail_rows = main_rows - full_blocks * block_rows    # python int
    steps = block_rows // rps                           # python int
    groups = rps // 8                                   # python int

    @pl.when(i == 0)
    def _():
        sx_ref[...] = jnp.zeros_like(sx_ref)
        sy_ref[...] = jnp.zeros_like(sy_ref)
        sxy_ref[...] = jnp.zeros_like(sxy_ref)
        sxx_ref[...] = jnp.zeros_like(sxx_ref)
        syy_ref[...] = jnp.zeros_like(syy_ref)

    def accum_block(valid_rows):
        # valid_rows: None for a full block (hot path, no masking) or a python
        # int giving the number of valid rows in the single partial tail block.
        zero = jnp.zeros((8, LANES), jnp.float32)

        def body(g, carry):
            ax, ay, axy, axx, ayy = carry
            r0 = pl.multiple_of(g * rps, rps)
            # Each x/y vreg is loaded from VMEM exactly once per pass and feeds
            # all five accumulators from registers (single-pass accumulation).
            x = x_ref[pl.ds(r0, rps), :].astype(jnp.float32)
            y = y_ref[pl.ds(r0, rps), :].astype(jnp.float32)
            if valid_rows is not None:
                row = r0 + lax.broadcasted_iota(jnp.int32, (rps, LANES), 0)
                valid = row < valid_rows
                fz = jnp.float32(0.0)
                x = jnp.where(valid, x, fz)
                y = jnp.where(valid, y, fz)
            xs = x.reshape(groups, 8, LANES)
            ys = y.reshape(groups, 8, LANES)
            ax = ax + jnp.sum(xs, axis=0)
            ay = ay + jnp.sum(ys, axis=0)
            axy = axy + jnp.sum(xs * ys, axis=0)
            axx = axx + jnp.sum(xs * xs, axis=0)
            ayy = ayy + jnp.sum(ys * ys, axis=0)
            return ax, ay, axy, axx, ayy

        ax, ay, axy, axx, ayy = lax.fori_loop(
            0, steps, body, (zero, zero, zero, zero, zero))
        sx_ref[...] += ax
        sy_ref[...] += ay
        sxy_ref[...] += axy
        sxx_ref[...] += axx
        syy_ref[...] += ayy

    # Hot path: full blocks, no masking.
    if full_blocks > 0:
        @pl.when(i < full_blocks)
        def _():
            accum_block(None)

    # Single partial tail block: mask out rows beyond `main_rows`.
    if tail_rows:
        @pl.when(i == full_blocks)
        def _():
            accum_block(tail_rows)

    @pl.when(i == pl.num_programs(0) - 1)
    def _():
        # Lane-dense (8, 128) partial sums, one write at the very end.
        o_ref[0] = sx_ref[...]
        o_ref[1] = sy_ref[...]
        o_ref[2] = sxy_ref[...]
        o_ref[3] = sxx_ref[...]
        o_ref[4] = syy_ref[...]


def _combine(s_x, s_y, s_xy, s_xx, s_yy, n_elems):
    # NOTE: single-pass form (sum(xy) - sum(x)sum(y)/n) cancels badly only
    # when |mean| >> std; for loss-scale activations f32 matches the two-pass
    # PyTorch reference.  For pathological inputs enable x64 and upcast here.
    n = jnp.float32(n_elems)
    cov = s_xy - s_x * s_y / n
    var_x = s_xx - s_x * s_x / n
    var_y = s_yy - s_y * s_y / n
    # Matches the PyTorch module exactly (no epsilon, returns r itself).
    return cov / (jnp.sqrt(var_x) * jnp.sqrt(var_y))


@functools.partial(jax.jit, static_argnames=("max_block_bytes",))
def pearson_loss(output, target, max_block_bytes=TARGET_BLOCK_BYTES):
    """Pearson correlation over all elements of `output` and `target` (scalar)."""
    assert output.shape == target.shape
    n_elems = output.size

    # Keep the native dtype: the kernel casts to f32 inside VMEM.
    x = output.reshape(-1)
    y = target.reshape(-1)

    main_rows = n_elems // LANES
    rem = n_elems - main_rows * LANES

    if main_rows == 0:
        # Fewer than 128 elements: no lane-dense tile to stream; plain jnp.
        xf = x.astype(jnp.float32)
        yf = y.astype(jnp.float32)
        return _combine(jnp.sum(xf), jnp.sum(yf), jnp.sum(xf * yf),
                        jnp.sum(xf * xf), jnp.sum(yf * yf), n_elems)

    main_len = main_rows * LANES
    # Aligned inputs (n % 128 == 0): the slice is the identity and the reshape
    # is free (zero-copy).  Misaligned inputs: only the 128-aligned prefix is
    # streamed by the kernel; the < 128-element tail is folded in below.
    x2d = x[:main_len].reshape(main_rows, LANES)
    y2d = y[:main_len].reshape(main_rows, LANES)

    itemsize = jnp.dtype(output.dtype).itemsize
    sub = {1: 32, 2: 16}.get(itemsize, 8)          # min sublane multiple for native dtype
    max_rows = max(max_block_bytes // (LANES * itemsize), sub)
    block_rows = min(max_rows, _round_up(main_rows, sub))
    rps = 64                                        # rows per fori_loop step
    while block_rows % rps:
        rps //= 2

    n_blocks = pl.cdiv(main_rows, block_rows)
    full_blocks = main_rows // block_rows
    tail_rows = main_rows - full_blocks * block_rows
    # Invariant the in-kernel masking relies on: the grid is exactly the full
    # blocks plus (optionally) one partial tail block.
    assert n_blocks == full_blocks + (1 if tail_rows else 0)
    assert block_rows % 8 == 0 and block_rows % rps == 0

    kernel = functools.partial(_pearson_partial_kernel,
                               main_rows, block_rows, rps)

    partials = pl.pallas_call(
        kernel,
        out_shape=jax.ShapeDtypeStruct((5, 8, LANES), jnp.float32),
        grid_spec=pltpu.PrefetchScalarGridSpec(
            num_scalar_prefetch=0,
            grid=(n_blocks,),
            in_specs=[
                pl.BlockSpec((block_rows, LANES), lambda i: (i, 0)),
                pl.BlockSpec((block_rows, LANES), lambda i: (i, 0)),
            ],
            out_specs=pl.BlockSpec((5, 8, LANES), lambda i: (0, 0, 0)),
            scratch_shapes=[pltpu.VMEM((8, LANES), jnp.float32)] * 5,
        ),
        compiler_params=pltpu.CompilerParams(
            dimension_semantics=("arbitrary",),
        ),
    )(x2d, y2d)

    sums = jnp.sum(partials, axis=(1, 2))  # (5,)
    s_x, s_y, s_xy, s_xx, s_yy = sums[0], sums[1], sums[2], sums[3], sums[4]

    if rem:
        # < 128-element tail handled in the wrapper (no full-array pad copy).
        xt = x[main_len:].astype(jnp.float32)
        yt = y[main_len:].astype(jnp.float32)
        s_x = s_x + jnp.sum(xt)
        s_y = s_y + jnp.sum(yt)
        s_xy = s_xy + jnp.sum(xt * yt)
        s_xx = s_xx + jnp.sum(xt * xt)
        s_yy = s_yy + jnp.sum(yt * yt)

    return _combine(s_x, s_y, s_xy, s_xx, s_yy, n_elems)


def _pearson_ref(output, target):
    x = output.astype(jnp.float32)
    y = target.astype(jnp.float32)
    vx = x - jnp.mean(x)
    vy = y - jnp.mean(y)
    return jnp.sum(vx * vy) / (jnp.sqrt(jnp.sum(vx ** 2)) * jnp.sqrt(jnp.sum(vy ** 2)))


if __name__ == "__main__":
    key = jax.random.PRNGKey(0)

    # 1) Lane-aligned NCHW-style shape (zero-copy path, single full block).
    k1, k2 = jax.random.split(key)
    out1 = jax.random.normal(k1, (2, 4, 16, 16), dtype=jnp.float32)
    tgt1 = 0.5 * out1 + jax.random.normal(k2, (2, 4, 16, 16), dtype=jnp.float32)
    r1 = jax.block_until_ready(pearson_loss(out1, tgt1))
    ref1 = jax.block_until_ready(_pearson_ref(out1, tgt1))
    assert jnp.allclose(r1, ref1, rtol=1e-4, atol=1e-5), (r1, ref1)

    # 2) Non-lane-aligned shape: kernel streams the 128-aligned prefix with an
    #    in-kernel row-masked partial block; <128-elem tail folded in wrapper.
    k3, k4 = jax.random.split(k1)
    out2 = jax.random.normal(k3, (2, 3, 17, 19), dtype=jnp.float32)
    tgt2 = -0.3 * out2 + jax.random.normal(k4, (2, 3, 17, 19), dtype=jnp.float32)
    r2 = jax.block_until_ready(pearson_loss(out2, tgt2))
    ref2 = jax.block_until_ready(_pearson_ref(out2, tgt2))
    assert jnp.allclose(r2, ref2, rtol=1e-4, atol=1e-5), (r2, ref2)

    # 3) Force a small block so multiple grid steps + a partial tail block +
    #    the wrapper lane-tail are all exercised on a small input.
    k5, k6 = jax.random.split(k3)
    out3 = jax.random.normal(k5, (2, 4, 33, 40), dtype=jnp.float32)
    tgt3 = 0.8 * out3 + jax.random.normal(k6, (2, 4, 33, 40), dtype=jnp.float32)
    r3 = jax.block_until_ready(pearson_loss(out3, tgt3, max_block_bytes=16 * 1024))
    ref3 = jax.block_until_ready(_pearson_ref(out3, tgt3))
    assert jnp.allclose(r3, ref3, rtol=1e-4, atol=1e-5), (r3, ref3)

    print("KERNEL_OK")
</pallas_src>

<mosaic_0001>
module attributes {stable_mosaic.version = 11 : i64} {
  func.func @_pearson_partial_kernel(%arg0: i32, %arg1: memref<16x128xf32, #tpu.memory_space<vmem>>, %arg2: memref<16x128xf32, #tpu.memory_space<vmem>>, %arg3: memref<5x8x128xf32, #tpu.memory_space<vmem>>, %arg4: memref<8x128xf32, #tpu.memory_space<vmem>>, %arg5: memref<8x128xf32, #tpu.memory_space<vmem>>, %arg6: memref<8x128xf32, #tpu.memory_space<vmem>>, %arg7: memref<8x128xf32, #tpu.memory_space<vmem>>, %arg8: memref<8x128xf32, #tpu.memory_space<vmem>>) attributes {dimension_semantics = [#tpu.dimension_semantics<arbitrary>], iteration_bounds = array<i64: 1>, scalar_prefetch = 0 : i64, scratch_operands = 5 : i64, tpu.core_type = #tpu.core_type<tc>, window_params = [{transform_indices = @transform_0, window_bounds = array<i64: 16, 128>}, {transform_indices = @transform_1, window_bounds = array<i64: 16, 128>}, {pipeline_mode = #tpu.pipeline_mode<synchronous>, transform_indices = @transform_2, window_bounds = array<i64: 5, 8, 128>}]} {
    %c0_i32 = arith.constant 0 : i32
    %0 = arith.cmpi eq, %arg0, %c0_i32 : i32
    %1 = arith.extui %0 : i1 to i32
    %c0_i32_0 = arith.constant 0 : i32
    %2 = arith.cmpi ne, %1, %c0_i32_0 : i32
    scf.if %2 {
      %cst = arith.constant 0.000000e+00 : f32
      %9 = vector.broadcast %cst : f32 to vector<8x128xf32>
      %c0 = arith.constant 0 : index
      %c0_4 = arith.constant 0 : index
      %10 = vector.load %arg4[%c0, %c0_4] : memref<8x128xf32, #tpu.memory_space<vmem>>, vector<8x128xf32>
      tpu.vector_store %arg4[%c0, %c0_4], %9 {strides = array<i32>} : memref<8x128xf32, #tpu.memory_space<vmem>>, vector<8x128xf32>,
      %cst_5 = arith.constant 0.000000e+00 : f32
      %11 = vector.broadcast %cst_5 : f32 to vector<8x128xf32>
      %c0_6 = arith.constant 0 : index
      %c0_7 = arith.constant 0 : index
      %12 = vector.load %arg5[%c0_6, %c0_7] : memref<8x128xf32, #tpu.memory_space<vmem>>, vector<8x128xf32>
      tpu.vector_store %arg5[%c0_6, %c0_7], %11 {strides = array<i32>} : memref<8x128xf32, #tpu.memory_space<vmem>>, vector<8x128xf32>,
      %cst_8 = arith.constant 0.000000e+00 : f32
      %13 = vector.broadcast %cst_8 : f32 to vector<8x128xf32>
      %c0_9 = arith.constant 0 : index
      %c0_10 = arith.constant 0 : index
      %14 = vector.load %arg6[%c0_9, %c0_10] : memref<8x128xf32, #tpu.memory_space<vmem>>, vector<8x128xf32>
      tpu.vector_store %arg6[%c0_9, %c0_10], %13 {strides = array<i32>} : memref<8x128xf32, #tpu.memory_space<vmem>>, vector<8x128xf32>,
      %cst_11 = arith.constant 0.000000e+00 : f32
      %15 = vector.broadcast %cst_11 : f32 to vector<8x128xf32>
      %c0_12 = arith.constant 0 : index
      %c0_13 = arith.constant 0 : index
      %16 = vector.load %arg7[%c0_12, %c0_13] : memref<8x128xf32, #tpu.memory_space<vmem>>, vector<8x128xf32>
      tpu.vector_store %arg7[%c0_12, %c0_13], %15 {strides = array<i32>} : memref<8x128xf32, #tpu.memory_space<vmem>>, vector<8x128xf32>,
      %cst_14 = arith.constant 0.000000e+00 : f32
      %17 = vector.broadcast %cst_14 : f32 to vector<8x128xf32>
      %c0_15 = arith.constant 0 : index
      %c0_16 = arith.constant 0 : index
      %18 = vector.load %arg8[%c0_15, %c0_16] : memref<8x128xf32, #tpu.memory_space<vmem>>, vector<8x128xf32>
      tpu.vector_store %arg8[%c0_15, %c0_16], %17 {strides = array<i32>} : memref<8x128xf32, #tpu.memory_space<vmem>>, vector<8x128xf32>,
    } else {
    }
    %c1_i32 = arith.constant 1 : i32
    %3 = arith.cmpi slt, %arg0, %c1_i32 : i32
    %4 = arith.extui %3 : i1 to i32
    %c0_i32_1 = arith.constant 0 : i32
    %5 = arith.cmpi ne, %4, %c0_i32_1 : i32
    scf.if %5 {
      %cst = arith.constant 0.000000e+00 : f32
      %9 = vector.broadcast %cst : f32 to vector<8x128xf32>
      %c0_i32_4 = arith.constant 0 : i32
      %c16_i32 = arith.constant 16 : i32
      %10 = arith.muli %c0_i32_4, %c16_i32 : i32
      %11 = tpu.assume_multiple %10, 16 : i32
      %12 = arith.index_cast %11 : i32 to index
      %c0 = arith.constant 0 : index
      %13 = vector.load %arg1[%12, %c0] : memref<16x128xf32, #tpu.memory_space<vmem>>, vector<16x128xf32>
      %14 = arith.index_cast %11 : i32 to index
      %c0_5 = arith.constant 0 : index
      %15 = vector.load %arg2[%14, %c0_5] : memref<16x128xf32, #tpu.memory_space<vmem>>, vector<16x128xf32>
      %16 = vector.shape_cast %13 : vector<16x128xf32> to vector<2x8x128xf32>
      %17 = vector.shape_cast %15 : vector<16x128xf32> to vector<2x8x128xf32>
      %cst_6 = arith.constant dense<0.000000e+00> : vector<8x128xf32>
      %18 = vector.multi_reduction <add>, %16, %cst_6 [0] : vector<2x8x128xf32> to vector<8x128xf32>
      %19 = arith.addf %9, %18 : vector<8x128xf32>
      %cst_7 = arith.constant dense<0.000000e+00> : vector<8x128xf32>
      %20 = vector.multi_reduction <add>, %17, %cst_7 [0] : vector<2x8x128xf32> to vector<8x128xf32>
      %21 = arith.addf %9, %20 : vector<8x128xf32>
      %22 = arith.mulf %16, %17 : vector<2x8x128xf32>
      %cst_8 = arith.constant dense<0.000000e+00> : vector<8x128xf32>
      %23 = vector.multi_reduction <add>, %22, %cst_8 [0] : vector<2x8x128xf32> to vector<8x128xf32>
      %24 = arith.addf %9, %23 : vector<8x128xf32>
      %25 = arith.mulf %16, %16 : vector<2x8x128xf32>
      %cst_9 = arith.constant dense<0.000000e+00> : vector<8x128xf32>
      %26 = vector.multi_reduction <add>, %25, %cst_9 [0] : vector<2x8x128xf32> to vector<8x128xf32>
      %27 = arith.addf %9, %26 : vector<8x128xf32>
      %28 = arith.mulf %17, %17 : vector<2x8x128xf32>
      %cst_10 = arith.constant dense<0.000000e+00> : vector<8x128xf32>
      %29 = vector.multi_reduction <add>, %28, %cst_10 [0] : vector<2x8x128xf32> to vector<8x128xf32>
      %30 = arith.addf %9, %29 : vector<8x128xf32>
      %c1_i32_11 = arith.constant 1 : i32
      %c0_12 = arith.constant 0 : index
      %c0_13 = arith.constant 0 : index
      %31 = vector.load %arg4[%c0_12, %c0_13] : memref<8x128xf32, #tpu.memory_space<vmem>>, vector<8x128xf32>
      %32 = arith.addf %31, %19 : vector<8x128xf32>
      %c0_14 = arith.constant 0 : index
      %c0_15 = arith.constant 0 : index
      %33 = vector.load %arg4[%c0_14, %c0_15] : memref<8x128xf32, #tpu.memory_space<vmem>>, vector<8x128xf32>
      tpu.vector_store %arg4[%c0_14, %c0_15], %32 {strides = array<i32>} : memref<8x128xf32, #tpu.memory_space<vmem>>, vector<8x128xf32>,
      %c0_16 = arith.constant 0 : index
      %c0_17 = arith.constant 0 : index
      %34 = vector.load %arg5[%c0_16, %c0_17] : memref<8x128xf32, #tpu.memory_space<vmem>>, vector<8x128xf32>
      %35 = arith.addf %34, %21 : vector<8x128xf32>
      %c0_18 = arith.constant 0 : index
      %c0_19 = arith.constant 0 : index
      %36 = vector.load %arg5[%c0_18, %c0_19] : memref<8x128xf32, #tpu.memory_space<vmem>>, vector<8x128xf32>
      tpu.vector_store %arg5[%c0_18, %c0_19], %35 {strides = array<i32>} : memref<8x128xf32, #tpu.memory_space<vmem>>, vector<8x128xf32>,
      %c0_20 = arith.constant 0 : index
      %c0_21 = arith.constant 0 : index
      %37 = vector.load %arg6[%c0_20, %c0_21] : memref<8x128xf32, #tpu.memory_space<vmem>>, vector<8x128xf32>
      %38 = arith.addf %37, %24 : vector<8x128xf32>
      %c0_22 = arith.constant 0 : index
      %c0_23 = arith.constant 0 : index
      %39 = vector.load %arg6[%c0_22, %c0_23] : memref<8x128xf32, #tpu.memory_space<vmem>>, vector<8x128xf32>
      tpu.vector_store %arg6[%c0_22, %c0_23], %38 {strides = array<i32>} : memref<8x128xf32, #tpu.memory_space<vmem>>, vector<8x128xf32>,
      %c0_24 = arith.constant 0 : index
      %c0_25 = arith.constant 0 : index
      %40 = vector.load %arg7[%c0_24, %c0_25] : memref<8x128xf32, #tpu.memory_space<vmem>>, vector<8x128xf32>
      %41 = arith.addf %40, %27 : vector<8x128xf32>
      %c0_26 = arith.constant 0 : index
      %c0_27 = arith.constant 0 : index
      %42 = vector.load %arg7[%c0_26, %c0_27] : memref<8x128xf32, #tpu.memory_space<vmem>>, vector<8x128xf32>
      tpu.vector_store %arg7[%c0_26, %c0_27], %41 {strides = array<i32>} : memref<8x128xf32, #tpu.memory_space<vmem>>, vector<8x128xf32>,
      %c0_28 = arith.constant 0 : index
      %c0_29 = arith.constant 0 : index
      %43 = vector.load %arg8[%c0_28, %c0_29] : memref<8x128xf32, #tpu.memory_space<vmem>>, vector<8x128xf32>
      %44 = arith.addf %43, %30 : vector<8x128xf32>
      %c0_30 = arith.constant 0 : index
      %c0_31 = arith.constant 0 : index
      %45 = vector.load %arg8[%c0_30, %c0_31] : memref<8x128xf32, #tpu.memory_space<vmem>>, vector<8x128xf32>
      tpu.vector_store %arg8[%c0_30, %c0_31], %44 {strides = array<i32>} : memref<8x128xf32, #tpu.memory_space<vmem>>, vector<8x128xf32>,
    } else {
    }
    %c0_i32_2 = arith.constant 0 : i32
    %6 = arith.cmpi eq, %arg0, %c0_i32_2 : i32
    %7 = arith.extui %6 : i1 to i32
    %c0_i32_3 = arith.constant 0 : i32
    %8 = arith.cmpi ne, %7, %c0_i32_3 : i32
    scf.if %8 {
      %c0 = arith.constant 0 : index
      %c0_4 = arith.constant 0 : index
      %9 = vector.load %arg4[%c0, %c0_4] : memref<8x128xf32, #tpu.memory_space<vmem>>, vector<8x128xf32>
      %c0_5 = arith.constant 0 : index
      %c0_6 = arith.constant 0 : index
      %c0_7 = arith.constant 0 : index
      %10 = vector.load %arg3[%c0_5, %c0_6, %c0_7] : memref<5x8x128xf32, #tpu.memory_space<vmem>>, vector<1x8x128xf32>
      %11 = vector.shape_cast %10 : vector<1x8x128xf32> to vector<8x128xf32>
      %12 = vector.shape_cast %9 : vector<8x128xf32> to vector<1x8x128xf32>
      tpu.vector_store %arg3[%c0_5, %c0_6, %c0_7], %12 {strides = array<i32>} : memref<5x8x128xf32, #tpu.memory_space<vmem>>, vector<1x8x128xf32>,
      %c0_8 = arith.constant 0 : index
      %c0_9 = arith.constant 0 : index
      %13 = vector.load %arg5[%c0_8, %c0_9] : memref<8x128xf32, #tpu.memory_space<vmem>>, vector<8x128xf32>
      %c1 = arith.constant 1 : index
      %c0_10 = arith.constant 0 : index
      %c0_11 = arith.constant 0 : index
      %14 = vector.load %arg3[%c1, %c0_10, %c0_11] : memref<5x8x128xf32, #tpu.memory_space<vmem>>, vector<1x8x128xf32>
      %15 = vector.shape_cast %14 : vector<1x8x128xf32> to vector<8x128xf32>
      %16 = vector.shape_cast %13 : vector<8x128xf32> to vector<1x8x128xf32>
      tpu.vector_store %arg3[%c1, %c0_10, %c0_11], %16 {strides = array<i32>} : memref<5x8x128xf32, #tpu.memory_space<vmem>>, vector<1x8x128xf32>,
      %c0_12 = arith.constant 0 : index
      %c0_13 = arith.constant 0 : index
      %17 = vector.load %arg6[%c0_12, %c0_13] : memref<8x128xf32, #tpu.memory_space<vmem>>, vector<8x128xf32>
      %c2 = arith.constant 2 : index
      %c0_14 = arith.constant 0 : index
      %c0_15 = arith.constant 0 : index
      %18 = vector.load %arg3[%c2, %c0_14, %c0_15] : memref<5x8x128xf32, #tpu.memory_space<vmem>>, vector<1x8x128xf32>
      %19 = vector.shape_cast %18 : vector<1x8x128xf32> to vector<8x128xf32>
      %20 = vector.shape_cast %17 : vector<8x128xf32> to vector<1x8x128xf32>
      tpu.vector_store %arg3[%c2, %c0_14, %c0_15], %20 {strides = array<i32>} : memref<5x8x128xf32, #tpu.memory_space<vmem>>, vector<1x8x128xf32>,
      %c0_16 = arith.constant 0 : index
      %c0_17 = arith.constant 0 : index
      %21 = vector.load %arg7[%c0_16, %c0_17] : memref<8x128xf32, #tpu.memory_space<vmem>>, vector<8x128xf32>
      %c3 = arith.constant 3 : index
      %c0_18 = arith.constant 0 : index
      %c0_19 = arith.constant 0 : index
      %22 = vector.load %arg3[%c3, %c0_18, %c0_19] : memref<5x8x128xf32, #tpu.memory_space<vmem>>, vector<1x8x128xf32>
      %23 = vector.shape_cast %22 : vector<1x8x128xf32> to vector<8x128xf32>
      %24 = vector.shape_cast %21 : vector<8x128xf32> to vector<1x8x128xf32>
      tpu.vector_store %arg3[%c3, %c0_18, %c0_19], %24 {strides = array<i32>} : memref<5x8x128xf32, #tpu.memory_space<vmem>>, vector<1x8x128xf32>,
      %c0_20 = arith.constant 0 : index
      %c0_21 = arith.constant 0 : index
      %25 = vector.load %arg8[%c0_20, %c0_21] : memref<8x128xf32, #tpu.memory_space<vmem>>, vector<8x128xf32>
      %c4 = arith.constant 4 : index
      %c0_22 = arith.constant 0 : index
      %c0_23 = arith.constant 0 : index
      %26 = vector.load %arg3[%c4, %c0_22, %c0_23] : memref<5x8x128xf32, #tpu.memory_space<vmem>>, vector<1x8x128xf32>
      %27 = vector.shape_cast %26 : vector<1x8x128xf32> to vector<8x128xf32>
      %28 = vector.shape_cast %25 : vector<8x128xf32> to vector<1x8x128xf32>
      tpu.vector_store %arg3[%c4, %c0_22, %c0_23], %28 {strides = array<i32>} : memref<5x8x128xf32, #tpu.memory_space<vmem>>, vector<1x8x128xf32>,
    } else {
    }
    return
  }
  func.func @transform_0(%arg0: i32) -> (i32, i32) {
    %c0_i32 = arith.constant 0 : i32
    %c0_i32_0 = arith.constant 0 : i32
    return %arg0, %c0_i32 : i32, i32
  }
  func.func @transform_1(%arg0: i32) -> (i32, i32) {
    %c0_i32 = arith.constant 0 : i32
    %c0_i32_0 = arith.constant 0 : i32
    return %arg0, %c0_i32 : i32, i32
  }
  func.func @transform_2(%arg0: i32) -> (i32, i32, i32) {
    %c0_i32 = arith.constant 0 : i32
    %c0_i32_0 = arith.constant 0 : i32
    %c0_i32_1 = arith.constant 0 : i32
    %c0_i32_2 = arith.constant 0 : i32
    return %c0_i32, %c0_i32_0, %c0_i32_1 : i32, i32, i32
  }
}

</mosaic_0001>

<llo_original>
// kernel: pearson_loss.1
$region0: #{pearson_loss.1}
  #allocation0 [shape = 'u32[]', space=smem, size = 0x4, offset = 0x4, fixed_abs, tag = 'smem constant byte address 0x4 - core index']
  #allocation1 [shape = 'u32[144,128]{1,0:T(1,128)}', space=vmem, size = 0x12000, scoped, tag = 'internal scratch']
  #allocation2 [shape = 'f32[8,128]{1,0:T(8,128)}', space=vmem, size = 0x1000, scoped, tag = 'scratch operand']
  #allocation3 [shape = 'f32[8,128]{1,0:T(8,128)}', space=vmem, size = 0x1000, scoped, tag = 'scratch operand']
  #allocation4 [shape = 'f32[8,128]{1,0:T(8,128)}', space=vmem, size = 0x1000, scoped, tag = 'scratch operand']
  #allocation5 [shape = 'f32[8,128]{1,0:T(8,128)}', space=vmem, size = 0x1000, scoped, tag = 'scratch operand']
  #allocation6 [shape = 'f32[8,128]{1,0:T(8,128)}', space=vmem, size = 0x1000, scoped, tag = 'scratch operand']
  %s0 = inlined_call_operand.vmem [shape: f32[16,128], index: 0, kind: input, shape index: {}]
  %s1 = inlined_call_operand.vmem [shape: f32[16,128], index: 1, kind: input, shape index: {}]
  %s2 = inlined_call_operand.vmem [shape: f32[5,8,128], index: 2, kind: output, shape index: {}]
  %s3 = sld [smem:[#allocation0]]
  $region30: #{pearson_loss.1} parent=0
    _
  %s5 = ssub.s32 1, %s3
  %s6 = scalar_select 0, %s5, %s3
  // Predicated region
  $region2: #{pearson_loss.1} parent=0 // pred_check
    _
  $region3: #{pearson_loss.1} parent=0 // pred_check_branch
    %8 = sbr.rel (0) target = $region5
  $region4: #{pearson_loss.1} parent=0 // pred_region
    _
  $region5: #{pearson_loss.1} parent=0 // pred_fallthru
    _
  // Predicated region
  $region6: #{pearson_loss.1} parent=0 // pred_check
    _
  $region7: #{pearson_loss.1} parent=0 // pred_check_branch
    %10 = sbr.rel (0) target = $region9
  $region8: #{pearson_loss.1} parent=0 // pred_region
    _
  $region9: #{pearson_loss.1} parent=0 // pred_fallthru
    _
  %p11 = scmp.eq.s32.totalorder 0, 0
  // Predicated region
  $region10: #{pearson_loss.1} parent=0 // pred_check
    %p12 = pneg %p11
  $region11: #{pearson_loss.1} parent=0 // pred_check_branch
    %14 = sbr.rel (%p12) target = $region13
  $region12: #{pearson_loss.1} parent=0 // pred_region
    %15 = vst [vmem:[#allocation2] sm:$0xff] 0.0
    %16 = vst [vmem:[#allocation3] sm:$0xff] 0.0
    %17 = vst [vmem:[#allocation4] sm:$0xff] 0.0
    %18 = vst [vmem:[#allocation5] sm:$0xff] 0.0
    %19 = vst [vmem:[#allocation6] sm:$0xff] 0.0
  $region13: #{pearson_loss.1} parent=0 // pred_fallthru
    _
  %p20 = scmp.lt.s32.totalorder 0, 1
  // Predicated region
  $region14: #{pearson_loss.1} parent=0 // pred_check
    %p21 = pneg %p20
  $region15: #{pearson_loss.1} parent=0 // pred_check_branch
    %23 = sbr.rel (%p21) target = $region17
  $region16: #{pearson_loss.1} parent=0 // pred_region
    %v24 = vld [vmem:[%s0] sm:$0xff]
    %v25 = vld [vmem:[%s0 + $0x8] sm:$0xff]
    %v26 = vld [vmem:[%s1] sm:$0xff]
    %v27 = vld [vmem:[%s1 + $0x8] sm:$0xff]
    %v28 = vadd.f32 %v24, %v25
    %v29 = vadd.f32 %v28, 0.0
    %v30 = vadd.f32 %v26, %v27
    %v31 = vadd.f32 %v30, 0.0
    %v32 = vmul.f32 %v24, %v26
    %v33 = vmul.f32 %v25, %v27
    %v34 = vadd.f32 %v32, %v33
    %v35 = vadd.f32 %v34, 0.0
    %v36 = vmul.f32 %v24, %v24
    %v37 = vmul.f32 %v25, %v25
    %v38 = vadd.f32 %v36, %v37
    %v39 = vadd.f32 %v38, 0.0
    %v40 = vmul.f32 %v26, %v26
    %v41 = vmul.f32 %v27, %v27
    %v42 = vadd.f32 %v40, %v41
    %v43 = vadd.f32 %v42, 0.0
    %v44 = vld [vmem:[#allocation2] sm:$0xff]
    %v45 = vadd.f32 %v44, %v29
    %46 = vst [vmem:[#allocation2] sm:$0xff] %v45
    %v47 = vld [vmem:[#allocation3] sm:$0xff]
    %v48 = vadd.f32 %v47, %v31
    %49 = vst [vmem:[#allocation3] sm:$0xff] %v48
    %v50 = vld [vmem:[#allocation4] sm:$0xff]
    %v51 = vadd.f32 %v50, %v35
    %52 = vst [vmem:[#allocation4] sm:$0xff] %v51
    %v53 = vld [vmem:[#allocation5] sm:$0xff]
    %v54 = vadd.f32 %v53, %v39
    %55 = vst [vmem:[#allocation5] sm:$0xff] %v54
    %v56 = vld [vmem:[#allocation6] sm:$0xff]
    %v57 = vadd.f32 %v56, %v43
    %58 = vst [vmem:[#allocation6] sm:$0xff] %v57
  $region17: #{pearson_loss.1} parent=0 // pred_fallthru
    _
  // Predicated region
  $region18: #{pearson_loss.1} parent=0 // pred_check
    %p59 = pneg %p11
  $region19: #{pearson_loss.1} parent=0 // pred_check_branch
    %61 = sbr.rel (%p59) target = $region21
  $region20: #{pearson_loss.1} parent=0 // pred_region
    %v62 = vld [vmem:[#allocation2] sm:$0xff]
    %63 = vst [vmem:[%s2] sm:$0xff] %v62
    %v64 = vld [vmem:[#allocation3] sm:$0xff]
    %s65 = scalar_lea.vmem %s2, 8
    %66 = vst [vmem:[%s65] sm:$0xff] %v64
    %v67 = vld [vmem:[#allocation4] sm:$0xff]
    %s68 = scalar_lea.vmem %s2, 16
    %69 = vst [vmem:[%s68] sm:$0xff] %v67
    %v70 = vld [vmem:[#allocation5] sm:$0xff]
    %s71 = scalar_lea.vmem %s2, 24
    %72 = vst [vmem:[%s71] sm:$0xff] %v70
    %v73 = vld [vmem:[#allocation6] sm:$0xff]
    %s74 = scalar_lea.vmem %s2, 32
    %75 = vst [vmem:[%s74] sm:$0xff] %v73
  $region21: #{pearson_loss.1} parent=0 // pred_fallthru
    _
  // Predicated region
  $region22: #{pearson_loss.1} parent=0 // pred_check
    _
  $region23: #{pearson_loss.1} parent=0 // pred_check_branch
    %77 = sbr.rel (0) target = $region25
  $region24: #{pearson_loss.1} parent=0 // pred_region
    _
  $region25: #{pearson_loss.1} parent=0 // pred_fallthru
    _
  // Predicated region
  $region26: #{pearson_loss.1} parent=0 // pred_check
    _
  $region27: #{pearson_loss.1} parent=0 // pred_check_branch
    %79 = sbr.rel (0) target = $region29
  $region28: #{pearson_loss.1} parent=0 // pred_region
    _
  $region29: #{pearson_loss.1} parent=0 // pred_fallthru
    _

</llo_original>
